<compile_context>
chip_gen: v5e
topology: v5e:2x2
jax: 0.10.0
libtpu: 0.0.40
codegen_flags: <defaults>
</compile_context>

<pallas_src>
import functools

import jax
import jax.numpy as jnp
from jax import lax
from jax.experimental import pallas as pl


_BN_EPS = 1e-5


def classifier_kernel(x_ref, w1_ref, gamma_ref, v_ref, b2_ref, out_ref):
    # ---- fc1: (B, F) @ (F, D), bf16 MXU inputs, f32 accumulation.
    # fc1 bias intentionally omitted: exactly cancelled by the training-mode BN
    # mean subtraction below.
    h = jnp.dot(x_ref[...], w1_ref[...], preferred_element_type=jnp.float32)  # (B, D) f32

    # ---- bn1: BatchNorm1d, training mode (biased batch variance).
    # One-pass stats: mean and E[h^2] are two *independent* XLU reductions
    # (shorter serial chain than mean -> center -> var). f32 throughout.
    inv_b = jnp.float32(1.0 / h.shape[0])
    mean = jnp.sum(h, axis=0, keepdims=True) * inv_b            # (1, D)
    mean_sq = jnp.sum(h * h, axis=0, keepdims=True) * inv_b     # (1, D)
    var = mean_sq - mean * mean
    bn_scale = gamma_ref[...] * lax.rsqrt(var + _BN_EPS)        # (1, D)
    h_bn = (h - mean) * bn_scale                                # (B, D) f32
    # beta is NOT added here: its contribution (beta @ v_eff) is pre-folded in
    # f32 into b2_ref by the wrapper (better accuracy, fewer VPU ops/operands).

    # ---- wn: weight-normalized linear with the g/||v|| scale pre-folded into
    # v_ref; only the data-dependent contraction happens here.
    logits = jnp.dot(h_bn.astype(v_ref.dtype), v_ref[...],
                     preferred_element_type=jnp.float32)        # (B, C) f32
    out_ref[...] = logits + b2_ref[...]


def prepare_classifier_params(w1, b1, gamma, beta, v, g, b2):
    """Parameter-only preprocessing. Run once per parameter update and reuse.

    w1: (F, D) = fc1.weight.T     b1: (1, D) = fc1.bias (mathematically a no-op
                                   here: cancelled by training-mode BN)
    gamma/beta: (1, D) BatchNorm1d affine parameters
    v:  (D, C) = wn.weight_v.T    g: (1, C) = wn.weight_g.T    b2: (1, C) = wn.bias
    """
    del b1  # exactly cancelled by the training-mode batch-norm mean subtraction
    # TODO(synk): no epsilon in the weight-norm scale (matches PyTorch
    # weight_norm, which also yields inf/NaN for an all-zero weight row).
    col_scale = g * lax.rsqrt(jnp.sum(jnp.square(v), axis=0, keepdims=True))  # (1, C)
    v_eff_f32 = v * col_scale                                   # (D, C) f32
    b2_eff = beta @ v_eff_f32 + b2                              # (1, C) f32 (beta folded in f32)
    return dict(
        w1_bf=w1.astype(jnp.bfloat16),                          # (F, D) bf16
        gamma=gamma.astype(jnp.float32),                        # (1, D) f32
        v_eff_bf=v_eff_f32.astype(jnp.bfloat16),                # (D, C) bf16
        b2_eff=b2_eff.astype(jnp.float32),                      # (1, C) f32
    )


@functools.partial(jax.jit, static_argnames=())
def classifier_apply(x, params):
    """Hot path: x (B, F) f32 -> logits (B, C) f32, using prepared params."""
    w1_bf = params["w1_bf"]
    gamma = params["gamma"]
    v_eff_bf = params["v_eff_bf"]
    b2_eff = params["b2_eff"]

    x_bf = x.astype(jnp.bfloat16)   # fused by jit with whatever produced x
    B = x.shape[0]
    C = v_eff_bf.shape[1]
    full = lambda a: pl.BlockSpec(a.shape, lambda: (0,) * a.ndim)

    return pl.pallas_call(
        classifier_kernel,
        out_shape=jax.ShapeDtypeStruct((B, C), jnp.float32),
        grid=(),
        in_specs=[full(x_bf), full(w1_bf), full(gamma), full(v_eff_bf), full(b2_eff)],
        out_specs=pl.BlockSpec((B, C), lambda: (0, 0)),
    )(x_bf, w1_bf, gamma, v_eff_bf, b2_eff)


def classifier_forward(x, w1, b1, gamma, beta, v, g, b2):
    """Convenience one-shot forward (prepares params + applies)."""
    params = prepare_classifier_params(w1, b1, gamma, beta, v, g, b2)
    return classifier_apply(x, params)


def _reference_forward(x, w1, b1, gamma, beta, v, g, b2):
    """Pure-JAX f32 reference mirroring the PyTorch module (training-mode BN)."""
    h = x @ w1 + b1
    mean = jnp.mean(h, axis=0, keepdims=True)
    var = jnp.mean((h - mean) ** 2, axis=0, keepdims=True)
    h_bn = (h - mean) * lax.rsqrt(var + _BN_EPS) * gamma + beta
    w2 = v * (g / jnp.sqrt(jnp.sum(v * v, axis=0, keepdims=True)))
    return h_bn @ w2 + b2


if __name__ == "__main__":
    # Small shapes consistent with the module: feature_dim=32, bottleneck_dim=128,
    # class_num=128, batch=8 (BatchNorm1d training mode needs B > 1).
    B, F, D, C = 8, 32, 128, 128

    key = jax.random.PRNGKey(0)
    kx, kw1, kb1, kg1, kbt1, kv, kg, kb2 = jax.random.split(key, 8)

    x = jax.random.normal(kx, (B, F), dtype=jnp.float32)

    # fc1 params (stored as (in, out) = PyTorch weight.T)
    w1 = jax.random.normal(kw1, (F, D), dtype=jnp.float32) * 0.05
    b1 = jax.random.normal(kb1, (1, D), dtype=jnp.float32) * 0.01

    # bn1 affine params (randomized so the test actually exercises them)
    gamma = 1.0 + 0.5 * jax.random.uniform(kg1, (1, D), dtype=jnp.float32)
    beta = 0.1 * jax.random.normal(kbt1, (1, D), dtype=jnp.float32)

    # weight-normalized linear: v stored transposed (D, C); g random (NOT the
    # column norms of v) so the g/||v|| scaling path is genuinely tested.
    v = jax.random.normal(kv, (D, C), dtype=jnp.float32) * 0.05
    g = 0.5 + jax.random.uniform(kg, (1, C), dtype=jnp.float32)
    b2 = jax.random.normal(kb2, (1, C), dtype=jnp.float32) * 0.01

    # Parameter-only prep done once; the hot path reuses it.
    params = prepare_classifier_params(w1, b1, gamma, beta, v, g, b2)
    y = classifier_apply(x, params)
    jax.block_until_ready(y)
    assert y.shape == (B, C)

    y_ref = _reference_forward(x, w1, b1, gamma, beta, v, g, b2)
    # Loose tolerance: kernel uses bf16 MXU operands with f32 accumulation.
    assert jnp.allclose(y, y_ref, atol=5e-2, rtol=5e-2), float(jnp.max(jnp.abs(y - y_ref)))

    print("KERNEL_OK")
</pallas_src>

<mosaic_0001>
module attributes {stable_mosaic.version = 11 : i64} {
  func.func @classifier_kernel(%arg0: memref<8x32xbf16, #tpu.memory_space<vmem>>, %arg1: memref<32x128xbf16, #tpu.memory_space<vmem>>, %arg2: memref<1x128xf32, #tpu.memory_space<vmem>>, %arg3: memref<128x128xbf16, #tpu.memory_space<vmem>>, %arg4: memref<1x128xf32, #tpu.memory_space<vmem>>, %arg5: memref<8x128xf32, #tpu.memory_space<vmem>>) attributes {dimension_semantics = [], scalar_prefetch = 0 : i64, scratch_operands = 0 : i64, tpu.core_type = #tpu.core_type<tc>} {
    %c0 = arith.constant 0 : index
    %c0_0 = arith.constant 0 : index
    %0 = vector.load %arg0[%c0, %c0_0] : memref<8x32xbf16, #tpu.memory_space<vmem>>, vector<8x32xbf16>
    %c0_1 = arith.constant 0 : index
    %c0_2 = arith.constant 0 : index
    %1 = vector.load %arg1[%c0_1, %c0_2] : memref<32x128xbf16, #tpu.memory_space<vmem>>, vector<32x128xbf16>
    %cst = arith.constant dense<0.000000e+00> : vector<8x128xf32>
    %2 = tpu.matmul %0, %1, %cst {dimension_numbers = #tpu.dot_dimension_numbers<[1], [0], [0], [1], [0, 0, 1, 1], [], []>} : vector<8x32xbf16>, vector<32x128xbf16>, vector<8x128xf32> -> vector<8x128xf32>
    %cst_3 = arith.constant dense<0.000000e+00> : vector<128xf32>
    %3 = vector.multi_reduction <add>, %2, %cst_3 [0] : vector<8x128xf32> to vector<128xf32>
    %4 = vector.shape_cast %3 : vector<128xf32> to vector<1x128xf32>
    %cst_4 = arith.constant 1.250000e-01 : f32
    %5 = vector.broadcast %cst_4 : f32 to vector<1x128xf32>
    %6 = arith.mulf %4, %5 : vector<1x128xf32>
    %7 = arith.mulf %2, %2 : vector<8x128xf32>
    %cst_5 = arith.constant dense<0.000000e+00> : vector<128xf32>
    %8 = vector.multi_reduction <add>, %7, %cst_5 [0] : vector<8x128xf32> to vector<128xf32>
    %9 = vector.shape_cast %8 : vector<128xf32> to vector<1x128xf32>
    %cst_6 = arith.constant 1.250000e-01 : f32
    %10 = vector.broadcast %cst_6 : f32 to vector<1x128xf32>
    %11 = arith.mulf %9, %10 : vector<1x128xf32>
    %12 = arith.mulf %6, %6 : vector<1x128xf32>
    %13 = arith.subf %11, %12 : vector<1x128xf32>
    %c0_7 = arith.constant 0 : index
    %c0_8 = arith.constant 0 : index
    %14 = vector.load %arg2[%c0_7, %c0_8] : memref<1x128xf32, #tpu.memory_space<vmem>>, vector<1x128xf32>
    %cst_9 = arith.constant 9.99999974E-6 : f32
    %15 = vector.broadcast %cst_9 : f32 to vector<1x128xf32>
    %16 = arith.addf %13, %15 : vector<1x128xf32>
    %17 = math.rsqrt %16 : vector<1x128xf32>
    %18 = arith.mulf %14, %17 : vector<1x128xf32>
    %19 = vector.broadcast %6 : vector<1x128xf32> to vector<8x128xf32>
    %20 = arith.subf %2, %19 : vector<8x128xf32>
    %21 = vector.broadcast %18 : vector<1x128xf32> to vector<8x128xf32>
    %22 = arith.mulf %20, %21 : vector<8x128xf32>
    %23 = arith.truncf %22 : vector<8x128xf32> to vector<8x128xbf16>
    %c0_10 = arith.constant 0 : index
    %c0_11 = arith.constant 0 : index
    %24 = vector.load %arg3[%c0_10, %c0_11] : memref<128x128xbf16, #tpu.memory_space<vmem>>, vector<128x128xbf16>
    %cst_12 = arith.constant dense<0.000000e+00> : vector<8x128xf32>
    %25 = tpu.matmul %23, %24, %cst_12 {dimension_numbers = #tpu.dot_dimension_numbers<[1], [0], [0], [1], [0, 0, 1, 1], [], []>} : vector<8x128xbf16>, vector<128x128xbf16>, vector<8x128xf32> -> vector<8x128xf32>
    %c0_13 = arith.constant 0 : index
    %c0_14 = arith.constant 0 : index
    %26 = vector.load %arg4[%c0_13, %c0_14] : memref<1x128xf32, #tpu.memory_space<vmem>>, vector<1x128xf32>
    %27 = vector.broadcast %26 : vector<1x128xf32> to vector<8x128xf32>
    %28 = arith.addf %25, %27 : vector<8x128xf32>
    %c0_15 = arith.constant 0 : index
    %c0_16 = arith.constant 0 : index
    %29 = vector.load %arg5[%c0_15, %c0_16] : memref<8x128xf32, #tpu.memory_space<vmem>>, vector<8x128xf32>
    tpu.vector_store %arg5[%c0_15, %c0_16], %28 {strides = array<i32>} : memref<8x128xf32, #tpu.memory_space<vmem>>, vector<8x128xf32>,
    return
  }
}

</mosaic_0001>

<llo_original>
// kernel: classifier_apply.1
$region0: #{classifier_apply.1}
  #allocation0 [shape = 'u32[]', space=smem, size = 0x4, offset = 0x4, fixed_abs, tag = 'smem constant byte address 0x4 - core index']
  #allocation1 [shape = 'u32[72,128]{1,0:T(1,128)}', space=vmem, size = 0x9000, scoped, tag = 'internal scratch']
  %s0 = inlined_call_operand.vmem [shape: bf16[8,32], index: 0, kind: input, shape index: {}]
  %s1 = inlined_call_operand.hbm [shape: bf16[32,128], index: 1, kind: input, shape index: {}]
  %s2 = inlined_call_operand.vmem [shape: f32[1,128], index: 2, kind: input, shape index: {}]
  %s3 = inlined_call_operand.hbm [shape: bf16[128,128], index: 3, kind: input, shape index: {}]
  %s4 = inlined_call_operand.vmem [shape: f32[1,128], index: 4, kind: input, shape index: {}]
  %s5 = inlined_call_operand.hbm [shape: f32[8,128], index: 5, kind: output, shape index: {}]
  %s6 = sld [smem:[#allocation0]]
  $region38: #{classifier_apply.1} parent=0
    _
  %s8 = ssub.s32 1, %s6
  %s9 = scalar_select 0, %s8, %s6
  $region1: #{classifier_apply.1} parent=0
    #allocation2 [shape = 'u8[8192]{0}', space=vmem, size = 0x2000, scoped, tag = 'input window, operand 1, single buffered']
    #allocation3 [shape = 's32[1]{0}', space=sflag, size = 0x4, scoped, tag = 'scoped memory for classifier_apply.1']
    #allocation4 [shape = 's32[1]{0}', space=sflag, size = 0x4, scoped, tag = 'scoped memory for classifier_apply.1']
    #allocation5 [shape = 'u8[32768]{0}', space=vmem, size = 0x8000, scoped, tag = 'input window, operand 3, single buffered']
    #allocation6 [shape = 's32[1]{0}', space=sflag, size = 0x4, scoped, tag = 'scoped memory for classifier_apply.1']
    #allocation7 [shape = 'u8[4096]{0}', space=vmem, size = 0x1000, scoped, tag = 'output window, operand 0, single buffered']
    %10 = vsyncpa [#allocation3], 0
    %11 = vsyncpa [#allocation6], 0
    %12 = vsyncpa [#allocation4], 0
    // Predicated region
    $region2: #{classifier_apply.1} parent=1 // pred_check
      _
    $region3: #{classifier_apply.1} parent=1 // pred_check_branch
      %14 = sbr.rel (0) target = $region5
    $region4: #{classifier_apply.1} parent=1 // pred_region
      _
    $region5: #{classifier_apply.1} parent=1 // pred_fallthru
      _
    // Predicated region
    $region6: #{classifier_apply.1} parent=1 // pred_check
      _
    $region7: #{classifier_apply.1} parent=1 // pred_check_branch
      %16 = sbr.rel (0) target = $region9
    $region8: #{classifier_apply.1} parent=1 // pred_region
      %18 = vsyncadd [#allocation3], 0
      %s19 = sshll.u32 %s1, 4
      %s20 = int_to_ptr.hbm [resolvable:$true] %s19
      %s21 = sshll.u32 [#allocation2], 4
      %s22 = int_to_ptr.vmem [resolvable:$true] %s21
      %27 = dma.hbm_to_vmem [thread:$0]  %s20, 256, %s22, [#allocation3], 64, 64, 4
    $region9: #{classifier_apply.1} parent=1 // pred_fallthru
      _
    // Predicated region
    $region10: #{classifier_apply.1} parent=1 // pred_check
      _
    $region11: #{classifier_apply.1} parent=1 // pred_check_branch
      %29 = sbr.rel (0) target = $region13
    $region12: #{classifier_apply.1} parent=1 // pred_region
      _
    $region13: #{classifier_apply.1} parent=1 // pred_fallthru
      _
    // Predicated region
    $region14: #{classifier_apply.1} parent=1 // pred_check
      _
    $region15: #{classifier_apply.1} parent=1 // pred_check_branch
      %31 = sbr.rel (0) target = $region17
    $region16: #{classifier_apply.1} parent=1 // pred_region
      %33 = vsyncadd [#allocation6], 0
      %s34 = sshll.u32 %s3, 4
      %s35 = int_to_ptr.hbm [resolvable:$true] %s34
      %s36 = sshll.u32 [#allocation5], 4
      %s37 = int_to_ptr.vmem [resolvable:$true] %s36
      %42 = dma.hbm_to_vmem [thread:$0]  %s35, 1024, %s37, [#allocation6], 64, 64, 4
    $region17: #{classifier_apply.1} parent=1 // pred_fallthru
      _
    // Predicated region
    $region18: #{classifier_apply.1} parent=1 // pred_check
      _
    $region19: #{classifier_apply.1} parent=1 // pred_check_branch
      %44 = sbr.rel (0) target = $region21
    $region20: #{classifier_apply.1} parent=1 // pred_region
      _
    $region21: #{classifier_apply.1} parent=1 // pred_fallthru
      _
    // Predicated region
    $region22: #{classifier_apply.1} parent=1 // pred_check
      _
    $region23: #{classifier_apply.1} parent=1 // pred_check_branch
      %46 = sbr.rel (0) target = $region25
    $region24: #{classifier_apply.1} parent=1 // pred_region
      %48 = dma.done [#allocation3], 256
    $region25: #{classifier_apply.1} parent=1 // pred_fallthru
      _
    // Predicated region
    $region26: #{classifier_apply.1} parent=1 // pred_check
      _
    $region27: #{classifier_apply.1} parent=1 // pred_check_branch
      %50 = sbr.rel (0) target = $region29
    $region28: #{classifier_apply.1} parent=1 // pred_region
      %52 = dma.done [#allocation6], 1024
    $region29: #{classifier_apply.1} parent=1 // pred_fallthru
      _
    %v54 = vld [vmem:[%s0] sm:$0xf]
    %v55 = vld [vmem:[#allocation2] sm:$0xf]
    %v56 = vld [vmem:[#allocation2 + $0x4] sm:$0xf]
    %v57 = vld [vmem:[#allocation2 + $0x8] sm:$0xf]
    %v58 = vld [vmem:[#allocation2 + $0xc] sm:$0xf]
    %v63 = vunpack.c.l.b16 %v55
    %v64 = vunpack.c.l.b16 %v56
    %v65 = vunpack.c.l.b16 %v57
    %v66 = vunpack.c.l.b16 %v58
    %v67 = vpack.c.b16 %v64, %v63
    %v68 = vpack.c.b16 %v66, %v65
    %vm71 = vcmask 261120
    %v73 = vsel %vm71, %v54, 0
    %75 = vmatpush.bf16.msra.mxu0 0
    %76 = vmatpush.bf16.msra.mxu0 0
    %77 = vmatpush.bf16.msra.mxu0 0
    %78 = vmatpush.bf16.msra.mxu0 0
    %79 = vmatpush.bf16.msra.mxu0 0
    %80 = vmatpush.bf16.msra.mxu0 0
    %81 = vmatpush.bf16.msra.mxu0 %v68
    %82 = vmatpush.bf16.msra.mxu0 %v67
    %83 = vmatmul.bf16.gmra.mxu0 %v73
    %v84 = vpop.f32.mrf.mxu0
    %v85 = vadd.f32 0.0, %v84
    %v86 = vpop.f32.mrf.mxu0
    %87 = vdwg.mxu0
    %v88 = vrot.slane %v85, 4
    %v89 = vadd.f32 %v85, %v88
    %v90 = vrot.slane %v89, 2
    %v91 = vadd.f32 %v89, %v90
    %v92 = vrot.slane %v91, 1
    %v93 = vadd.f32 %v91, %v92
    %v94 = vmul.f32 %v93, 0.125
    %v95 = vmul.f32 %v85, %v85
    %v96 = vrot.slane %v95, 4
    %v97 = vadd.f32 %v95, %v96
    %v98 = vrot.slane %v97, 2
    %v99 = vadd.f32 %v97, %v98
    %v100 = vrot.slane %v99, 1
    %v101 = vadd.f32 %v99, %v100
    %v102 = vmul.f32 %v101, 0.125
    %v103 = vmul.f32 %v94, %v94
    %v104 = vsub.f32 %v102, %v103
    %v105 = vld [vmem:[%s2] sm:$0x1]
    %v106 = vadd.f32 %v104, 1e-05
    %v107 = vrsqrt.pop %v106
    %v108 = vmul.f32 %v107, %v106
    %v109 = vmul.f32 %v108, %v107
    %v110 = vmul.f32 0.5, %v109
    %v111 = vsub.f32 1.5, %v110
    %v112 = vmul.f32 %v107, %v111
    %vm113 = vweird.f32 %v106
    %vm114 = vweird.f32 %v107
    %vm115 = vmor %vm113, %vm114
    %v116 = vsel %vm115, %v107, %v112
    %v117 = vmul.f32 %v105, %v116
    %v118 = vsub.f32 %v85, %v94
    %v120 = vperm.slane %v117, 0
    %v122 = vmul.f32 %v118, %v120
    %v123 = vpack.c.bf16 %v122, %v122
    %v124 = vld [vmem:[#allocation5] sm:$0xf]
    %v125 = vld [vmem:[#allocation5 + $0x4] sm:$0xf]
    %v126 = vld [vmem:[#allocation5 + $0x8] sm:$0xf]
    %v127 = vld [vmem:[#allocation5 + $0xc] sm:$0xf]
    %v128 = vld [vmem:[#allocation5 + $0x10] sm:$0xf]
    %v129 = vld [vmem:[#allocation5 + $0x14] sm:$0xf]
    %v130 = vld [vmem:[#allocation5 + $0x18] sm:$0xf]
    %v131 = vld [vmem:[#allocation5 + $0x1c] sm:$0xf]
    %v132 = vld [vmem:[#allocation5 + $0x20] sm:$0xf]
    %v133 = vld [vmem:[#allocation5 + $0x24] sm:$0xf]
    %v134 = vld [vmem:[#allocation5 + $0x28] sm:$0xf]
    %v135 = vld [vmem:[#allocation5 + $0x2c] sm:$0xf]
    %v136 = vld [vmem:[#allocation5 + $0x30] sm:$0xf]
    %v137 = vld [vmem:[#allocation5 + $0x34] sm:$0xf]
    %v138 = vld [vmem:[#allocation5 + $0x38] sm:$0xf]
    %v139 = vld [vmem:[#allocation5 + $0x3c] sm:$0xf]
    %v140 = vld [vmem:[%s4] sm:$0x1]
    %v142 = vperm.slane %v140, 0
    %v160 = vunpack.c.l.b16 %v124
    %v161 = vunpack.c.l.b16 %v125
    %v162 = vunpack.c.l.b16 %v126
    %v163 = vunpack.c.l.b16 %v127
    %v164 = vunpack.c.l.b16 %v128
    %v165 = vunpack.c.l.b16 %v129
    %v166 = vunpack.c.l.b16 %v130
    %v167 = vunpack.c.l.b16 %v131
    %v168 = vunpack.c.l.b16 %v132
    %v169 = vunpack.c.l.b16 %v133
    %v170 = vunpack.c.l.b16 %v134
    %v171 = vunpack.c.l.b16 %v135
    %v172 = vunpack.c.l.b16 %v136
    %v173 = vunpack.c.l.b16 %v137
    %v174 = vunpack.c.l.b16 %v138
    %v175 = vunpack.c.l.b16 %v139
    %v176 = vpack.c.b16 %v161, %v160
    %v177 = vpack.c.b16 %v163, %v162
    %v178 = vpack.c.b16 %v165, %v164
    %v179 = vpack.c.b16 %v167, %v166
    %v180 = vpack.c.b16 %v169, %v168
    %v181 = vpack.c.b16 %v171, %v170
    %v182 = vpack.c.b16 %v173, %v172
    %v183 = vpack.c.b16 %v175, %v174
    %192 = vmatpush.bf16.msra.mxu0 %v183
    %193 = vmatpush.bf16.msra.mxu0 %v182
    %194 = vmatpush.bf16.msra.mxu0 %v181
    %195 = vmatpush.bf16.msra.mxu0 %v180
    %196 = vmatpush.bf16.msra.mxu0 %v179
    %197 = vmatpush.bf16.msra.mxu0 %v178
    %198 = vmatpush.bf16.msra.mxu0 %v177
    %199 = vmatpush.bf16.msra.mxu0 %v176
    %200 = vmatmul.bf16.gmra.mxu0 %v123
    %v201 = vpop.f32.mrf.mxu0
    %v202 = vadd.f32 %v142, %v201
    %v203 = vpop.f32.mrf.mxu0
    %204 = vdwg.mxu0
    %205 = vst [vmem:[#allocation7] sm:$0xff] %v202
    // Predicated region
    $region30: #{classifier_apply.1} parent=1 // pred_check
      _
    $region31: #{classifier_apply.1} parent=1 // pred_check_branch
      %207 = sbr.rel (0) target = $region33
    $region32: #{classifier_apply.1} parent=1 // pred_region
      %209 = vsyncadd [#allocation4], 0
      %s211 = sshll.u32 [#allocation7], 4
      %s212 = int_to_ptr.vmem [resolvable:$true] %s211
      %s213 = sshll.u32 %s5, 4
      %s214 = int_to_ptr.hbm [resolvable:$true] %s213
      %216 = dma.vmem_to_hbm [thread:$0]  %s212, 128, %s214, [#allocation4]
    $region33: #{classifier_apply.1} parent=1 // pred_fallthru
      _
    // Predicated region
    $region34: #{classifier_apply.1} parent=1 // pred_check
      _
    $region35: #{classifier_apply.1} parent=1 // pred_check_branch
      %218 = sbr.rel (0) target = $region37
    $region36: #{classifier_apply.1} parent=1 // pred_region
      %220 = dma.done [#allocation4], 128
    $region37: #{classifier_apply.1} parent=1 // pred_fallthru
      _
    %221 = vsyncpa [#allocation3], 1
    %222 = vsyncpa [#allocation6], 1
    %223 = vsyncpa [#allocation4], 1

</llo_original>
